<compile_context>
chip_gen: v7x
topology: tpu7x:2x2x1
jax: 0.10.0
libtpu: 0.0.40
codegen_flags: <defaults>
</compile_context>

<pallas_src>
import functools

import jax
import jax.numpy as jnp
import numpy as np
from jax.experimental import pallas as pl
from jax.experimental.pallas import tpu as pltpu

LEAKY_SLOPE = 0.3
BN_EPS = 1e-5

# ---------------------------------------------------------------------------
# One-time pltpu.roll rotation-direction probe. The conv taps need
# out[:, m] = in[:, m + s]; this pins down whether pltpu.roll follows
# jnp.roll's convention (out[j] = in[j - shift]) so the main kernel always
# picks the correct shift sign. Probe and main call run in the same process /
# backend, and the result is cross-checked against the pure-JAX reference.
# ---------------------------------------------------------------------------
_ROLL_LIKE_JNP = None


def _probe_roll_like_jnp() -> bool:
    def k(x_ref, o_ref):
        o_ref[...] = pltpu.roll(x_ref[...], shift=1, axis=1)

    x = jnp.tile(jnp.arange(128, dtype=jnp.float32)[None, :], (8, 1))
    vmem = pl.BlockSpec(memory_space=pltpu.MemorySpace.VMEM)
    y = pl.pallas_call(
        k, out_shape=jax.ShapeDtypeStruct((8, 128), jnp.float32),
        in_specs=[vmem], out_specs=vmem)(x)
    return bool(jax.device_get(y)[0, 0] == 127.0)


def _roll_like_jnp() -> bool:
    global _ROLL_LIKE_JNP
    if _ROLL_LIKE_JNP is None:
        _ROLL_LIKE_JNP = _probe_roll_like_jnp()
    return _ROLL_LIKE_JNP


# ---------------------------------------------------------------------------
# Kernel
# ---------------------------------------------------------------------------
def _refinenet_kernel(x_ref,
                      w1_ref, gb1_ref,
                      w2_ref, gb2_ref,
                      w3_ref, gb3_ref,
                      o_ref, stack_ref,
                      *, height, width, m_total, roll_like_jnp):
    """All refs are VMEM-resident.

    x_ref:     (2, M)            input; channels on sublanes, flat N*H*W on lanes
    w*_ref:    (3, Cout, 3*Cin)  conv weights; row dy, columns ordered dx*Cin + c
    gb*_ref:   (2, Cout, 1)      BN gamma / beta (conv bias cancels under BN)
    o_ref:     (2, M)            output (lane-dense)
    stack_ref: (pad8(48), M)     im2col scratch for one dy row (3*Cin rows used)
    """
    x2 = x_ref[...]                                            # (2, M)

    # --- border-validity masks, shared by all layers, built from iota -----
    idx = jax.lax.broadcasted_iota(jnp.int32, (1, m_total), 1)
    pos = idx % (height * width)                               # index in image
    yy = pos // width
    xx = pos % width
    yvalid = {-1: yy >= 1, 0: None, 1: yy < height - 1}
    xvalid = {-1: xx >= 1, 0: None, 1: xx < width - 1}
    masks = {}
    for oy in (-1, 0, 1):
        for ox in (-1, 0, 1):
            conds = [c for c in (yvalid[oy], xvalid[ox]) if c is not None]
            if not conds:
                masks[(oy, ox)] = None                         # center tap: all valid
            elif len(conds) == 1:
                masks[(oy, ox)] = conds[0].astype(jnp.float32)
            else:
                masks[(oy, ox)] = (conds[0] & conds[1]).astype(jnp.float32)

    def shift_flat(h, s):
        # out[:, m] = h[:, m + s]; wrap-around lanes are zeroed by the mask.
        if s == 0:
            return h
        amt = (-s) % m_total if roll_like_jnp else s % m_total
        return pltpu.roll(h, shift=amt, axis=1)

    def conv_bn_lrelu(h, w_ref, gb_ref):
        cin = h.shape[0]
        # Per kernel row dy: write the 3 dx taps into an im2col stack and
        # contract with one (Cout, 3*Cin) @ (3*Cin, M) MXU dot (3 dots/layer
        # instead of 9 tiny K<=16 dots, and only 2 accumulate adds).
        acc = None
        for dy in range(3):
            oy = dy - 1
            for dx in range(3):
                ox = dx - 1
                tap = shift_flat(h, oy * width + ox)           # (Cin, M)
                m = masks[(oy, ox)]
                if m is not None:                              # skip center tap
                    tap = tap * m
                stack_ref[pl.ds(dx * cin, cin), :] = tap
            part = jnp.dot(w_ref[dy], stack_ref[pl.ds(0, 3 * cin), :],
                           preferred_element_type=jnp.float32)  # (Cout, M)
            acc = part if acc is None else acc + part
        # Train-mode BatchNorm (two-pass variance) + LeakyReLU as a
        # per-channel affine. Conv bias omitted: it cancels against the mean.
        mean = jnp.mean(acc, axis=1, keepdims=True)            # (Cout, 1)
        centered = acc - mean
        var = jnp.mean(centered * centered, axis=1, keepdims=True)
        scale = gb_ref[0] * jax.lax.rsqrt(var + BN_EPS)        # (Cout, 1)
        zn = centered * scale + gb_ref[1]
        return jnp.maximum(zn, LEAKY_SLOPE * zn)               # LeakyReLU(0.3)

    h1 = conv_bn_lrelu(x2, w1_ref, gb1_ref)                    # 2  -> 8
    h2 = conv_bn_lrelu(h1, w2_ref, gb2_ref)                    # 8  -> 16
    h3 = conv_bn_lrelu(h2, w3_ref, gb3_ref)                    # 16 -> 2
    o_ref[...] = h3 + x2                                       # skip connection


# ---------------------------------------------------------------------------
# Wrapper
# ---------------------------------------------------------------------------
def _to_dy_weight(w_oihw):
    # (Cout, Cin, 3, 3) -> (3, Cout, 3*Cin); [dy, o, dx*Cin + c] = w[o, c, dy, dx]
    cout, cin = w_oihw.shape[0], w_oihw.shape[1]
    return jnp.transpose(w_oihw, (2, 0, 3, 1)).reshape(3, cout, 3 * cin)


@functools.partial(jax.jit, static_argnames=("roll_like_jnp",))
def _refinenet_forward_impl(x_nchw, params, roll_like_jnp):
    n, c, h, w = x_nchw.shape
    m_total = n * h * w

    # Lane-dense packing: (N, C, H, W) -> (C, N*H*W). Layout plumbing only.
    x_flat = jnp.transpose(x_nchw, (1, 0, 2, 3)).reshape(c, m_total)

    flat_args = [x_flat]
    max_cin = 0
    for lyr in ("l1", "l2", "l3"):
        wt, _b, g, be = params[lyr]      # conv bias cancels under train-mode BN
        max_cin = max(max_cin, wt.shape[1])
        gb = jnp.stack([g.reshape(-1, 1), be.reshape(-1, 1)], axis=0)
        flat_args += [_to_dy_weight(wt), gb]
    stack_rows = ((3 * max_cin + 7) // 8) * 8                  # pad to sublanes

    vmem = pl.BlockSpec(memory_space=pltpu.MemorySpace.VMEM)
    kernel = functools.partial(_refinenet_kernel, height=h, width=w,
                               m_total=m_total, roll_like_jnp=roll_like_jnp)
    # TODO(synk): for inputs much larger than this toy size, tile the N*H axis
    # (1-row halo) with a BlockSpec grid, two-pass BN partial sums + finalize,
    # and mark the spatial axis "parallel" so both v7x TensorCores run; at
    # 2x2x16x16 a single resident call wins.
    out_flat = pl.pallas_call(
        kernel,
        out_shape=jax.ShapeDtypeStruct((c, m_total), jnp.float32),
        in_specs=[vmem] * len(flat_args),
        out_specs=vmem,
        scratch_shapes=[pltpu.VMEM((stack_rows, m_total), jnp.float32)],
    )(*flat_args)
    return jnp.transpose(out_flat.reshape(c, n, h, w), (1, 0, 2, 3))


def refinenet_forward(x_nchw, params):
    """x_nchw: (N, 2, H, W) float32 -> (N, 2, H, W) float32."""
    return _refinenet_forward_impl(x_nchw, params, roll_like_jnp=_roll_like_jnp())


# ---------------------------------------------------------------------------
# Pure-JAX reference (same semantics, keeps the conv bias) and synthetic params.
# ---------------------------------------------------------------------------
def _reference_forward(x_nchw, params):
    x = jnp.transpose(x_nchw, (0, 2, 3, 1))

    def block(h, w_oihw, b, g, be):
        w_hwio = jnp.transpose(w_oihw, (2, 3, 1, 0))
        z = jax.lax.conv_general_dilated(
            h, w_hwio, window_strides=(1, 1), padding="SAME",
            dimension_numbers=("NHWC", "HWIO", "NHWC")) + b.reshape(1, 1, 1, -1)
        mean = jnp.mean(z, axis=(0, 1, 2), keepdims=True)
        var = jnp.mean((z - mean) ** 2, axis=(0, 1, 2), keepdims=True)
        zn = ((z - mean) * jax.lax.rsqrt(var + BN_EPS)
              * g.reshape(1, 1, 1, -1) + be.reshape(1, 1, 1, -1))
        return jnp.where(zn >= 0, zn, LEAKY_SLOPE * zn)

    h = x
    for lyr in ("l1", "l2", "l3"):
        h = block(h, *params[lyr])
    out = h + x
    return jnp.transpose(out, (0, 3, 1, 2))


def _init_params(key):
    dims = [("l1", 2, 8), ("l2", 8, 16), ("l3", 16, 2)]
    params = {}
    for name, cin, cout in dims:
        key, kw, kb, kg, kbe = jax.random.split(key, 5)
        w = 0.3 * jax.random.normal(kw, (cout, cin, 3, 3), jnp.float32)
        b = 0.1 * jax.random.normal(kb, (cout,), jnp.float32)
        gamma = 1.0 + 0.1 * jax.random.normal(kg, (cout,), jnp.float32)
        beta = 0.1 * jax.random.normal(kbe, (cout,), jnp.float32)
        params[name] = (w, b, gamma, beta)
    return params


if __name__ == "__main__":
    key = jax.random.PRNGKey(0)
    k_x, k_p = jax.random.split(key)

    N, C, H, W = 2, 2, 16, 16           # module input: NCHW with 2 channels
    x = jax.random.normal(k_x, (N, C, H, W), jnp.float32)
    params = _init_params(k_p)

    out = jax.block_until_ready(refinenet_forward(x, params))
    ref = jax.block_until_ready(_reference_forward(x, params))

    assert out.shape == (N, C, H, W), out.shape
    np.testing.assert_allclose(np.asarray(out), np.asarray(ref),
                               rtol=2e-4, atol=2e-4)
    print("KERNEL_OK")
</pallas_src>

<mosaic_0001>
module attributes {stable_mosaic.version = 11 : i64} {
  func.func @k(%arg0: memref<8x128xf32, #tpu.memory_space<vmem>>, %arg1: memref<8x128xf32, #tpu.memory_space<vmem>>) attributes {dimension_semantics = [], scalar_prefetch = 0 : i64, scratch_operands = 0 : i64, tpu.core_type = #tpu.core_type<tc>} {
    %c0 = arith.constant 0 : index
    %c0_0 = arith.constant 0 : index
    %0 = vector.load %arg0[%c0, %c0_0] : memref<8x128xf32, #tpu.memory_space<vmem>>, vector<8x128xf32>
    %c1_i32 = arith.constant 1 : i32
    %1 = tpu.dynamic_rotate %0 by %c1_i32 dim 1 : vector<8x128xf32>, i32 -> vector<8x128xf32>
    %c0_1 = arith.constant 0 : index
    %c0_2 = arith.constant 0 : index
    %2 = vector.load %arg1[%c0_1, %c0_2] : memref<8x128xf32, #tpu.memory_space<vmem>>, vector<8x128xf32>
    tpu.vector_store %arg1[%c0_1, %c0_2], %1 {strides = array<i32>} : memref<8x128xf32, #tpu.memory_space<vmem>>, vector<8x128xf32>,
    return
  }
}

</mosaic_0001>

<llo_original>
// kernel: tpu_custom_call.1
$region0: #{tpu_custom_call.1}
  #allocation0 [shape = 'u32[]', space=smem, size = 0x4, offset = 0x4, fixed_abs, tag = 'smem constant byte address 0x4 - core index']
  #allocation1 [shape = 'u32[144,128]{1,0:T(1,128)}', space=vmem, size = 0x12000, scoped, tag = 'internal scratch']
  %s0 = inlined_call_operand.hbm [shape: f32[8,128], index: 0, kind: input, shape index: {}]
  %s1 = inlined_call_operand.hbm [shape: f32[8,128], index: 1, kind: output, shape index: {}]
  %s2 = sld [smem:[#allocation0]]
  $region18: #{tpu_custom_call.1} parent=0
    _
  %s4 = ssub.s32 1, %s2
  %s5 = scalar_select 0, %s4, %s2
  $region1: #{tpu_custom_call.1} parent=0
    #allocation2 [shape = 'u8[4096]{0}', space=vmem, size = 0x1000, scoped, tag = 'input window, operand 0, single buffered']
    #allocation3 [shape = 's32[1]{0}', space=sflag, size = 0x4, scoped, tag = 'scoped memory for tpu_custom_call.1']
    #allocation4 [shape = 's32[1]{0}', space=sflag, size = 0x4, scoped, tag = 'scoped memory for tpu_custom_call.1']
    #allocation5 [shape = 'u8[4096]{0}', space=vmem, size = 0x1000, scoped, tag = 'output window, operand 0, single buffered']
    %6 = vsyncpa [#allocation3], 0
    %7 = vsyncpa [#allocation4], 0
    // Predicated region
    $region2: #{tpu_custom_call.1} parent=1 // pred_check
      _
    $region3: #{tpu_custom_call.1} parent=1 // pred_check_branch
      %9 = sbr.rel (0) target = $region5
    $region4: #{tpu_custom_call.1} parent=1 // pred_region
      %s11 = ssub.s32 128, 128
      %12 = vsyncadd [#allocation3], %s11
      %s14 = sshll.u32 [#allocation2], 4
      %s15 = int_to_ptr.vmem [resolvable:$true] %s14
      %17 = dma.hbm_to_vmem [thread:$0]  %s0, 128, %s15, [#allocation3]
    $region5: #{tpu_custom_call.1} parent=1 // pred_fallthru
      _
    // Predicated region
    $region6: #{tpu_custom_call.1} parent=1 // pred_check
      _
    $region7: #{tpu_custom_call.1} parent=1 // pred_check_branch
      %19 = sbr.rel (0) target = $region9
    $region8: #{tpu_custom_call.1} parent=1 // pred_region
      %20 = dma.done [#allocation3], 128
    $region9: #{tpu_custom_call.1} parent=1 // pred_fallthru
      _
    %v21 = vld [vmem:[#allocation2] sm:$0xff]
    %22 = vrot.lane.b32.xlu0 %v21, 1
    %v23 = vpop.permute.xlu0 %22
    %24 = vst [vmem:[#allocation5] sm:$0xff] %v23
    // Predicated region
    $region10: #{tpu_custom_call.1} parent=1 // pred_check
      _
    $region11: #{tpu_custom_call.1} parent=1 // pred_check_branch
      %26 = sbr.rel (0) target = $region13
    $region12: #{tpu_custom_call.1} parent=1 // pred_region
      %s28 = ssub.s32 128, 128
      %29 = vsyncadd [#allocation4], %s28
      %s31 = sshll.u32 [#allocation5], 4
      %s32 = int_to_ptr.vmem [resolvable:$true] %s31
      %34 = dma.vmem_to_hbm [thread:$0]  %s32, 128, %s1, [#allocation4]
    $region13: #{tpu_custom_call.1} parent=1 // pred_fallthru
      _
    // Predicated region
    $region14: #{tpu_custom_call.1} parent=1 // pred_check
      _
    $region15: #{tpu_custom_call.1} parent=1 // pred_check_branch
      %36 = sbr.rel (0) target = $region17
    $region16: #{tpu_custom_call.1} parent=1 // pred_region
      %37 = dma.done [#allocation4], 128
    $region17: #{tpu_custom_call.1} parent=1 // pred_fallthru
      _
    %38 = vsyncpa [#allocation3], 1
    %39 = vsyncpa [#allocation4], 1

</llo_original>
